<compile_context>
chip_gen: v5e
topology: v5e:2x2
jax: 0.10.0
libtpu: 0.0.40
codegen_flags: <defaults>
</compile_context>

<pallas_src>
import functools

import jax
import jax.numpy as jnp
from jax import lax
from jax.experimental import pallas as pl
from jax.experimental.pallas import tpu as pltpu


def _round_up(n, m):
    return ((n + m - 1) // m) * m


def _clustering_kernel(x_ref, w_ref, wnorm_ref, out_ref, *, inv_alpha, exponent, k_valid):
    # x_ref:     (TB, D_pad)  current batch tile
    # w_ref:     (K_pad, D_pad) full (padded) cluster centers, resident every step
    # wnorm_ref: (1, K_pad)   precomputed ||w_k||^2 (0 for padded clusters)
    # out_ref:   (TB, K_pad)  lane-dense soft assignments (padded cols are 0)
    x = x_ref[...].astype(jnp.float32)
    w = w_ref[...].astype(jnp.float32)

    # Cross term on the MXU: (TB, D) . (K, D)^T -> (TB, K), f32 accumulation.
    xw = lax.dot_general(
        x, w,
        dimension_numbers=(((1,), (1,)), ((), ())),
        preferred_element_type=jnp.float32,
    )
    x_norm = jnp.sum(x * x, axis=1, keepdims=True)          # (TB, 1)

    # ||x - w||^2 = ||x||^2 + ||w||^2 - 2 x.w ; clamp cancellation noise.
    d = x_norm + wnorm_ref[...] - 2.0 * xw
    d = jnp.maximum(d, 0.0)

    # Student's-t kernel: q = (1 + d/alpha)^(-(alpha+1)/2)
    q = 1.0 / (1.0 + d * inv_alpha)
    if exponent != 1.0:                                      # alpha=1 -> identity, skip pow
        q = q ** exponent

    # Mask padded cluster columns out of the row normalizer.
    col = lax.broadcasted_iota(jnp.int32, q.shape, 1)
    q = jnp.where(col < k_valid, q, 0.0)

    # Exact row-normalization (rows must sum to 1 to tight tolerance).
    out_ref[...] = (q / jnp.sum(q, axis=1, keepdims=True)).astype(out_ref.dtype)


def clustering_layer(x, weight, alpha=1.0, *, batch_tile=128):
    """Pallas forward of ClusterlingLayer.

    x:      (B, D) float32
    weight: (K, D) float32
    returns (B, K) float32 soft assignments (rows sum to 1).
    """
    B, D = x.shape
    K, D2 = weight.shape
    assert D == D2, "feature dims must match"

    D_pad = _round_up(D, 128)
    K_pad = _round_up(K, 128)
    TB = min(batch_tile, _round_up(B, 8))
    B_pad = _round_up(B, TB)

    # Zero-pad: extra D columns contribute 0 to every norm / dot product, so
    # distances are unchanged; extra K rows are masked inside the kernel.
    x_p = jnp.zeros((B_pad, D_pad), jnp.float32).at[:B, :D].set(x.astype(jnp.float32))
    w_p = jnp.zeros((K_pad, D_pad), jnp.float32).at[:K, :D].set(weight.astype(jnp.float32))
    w_norm = jnp.sum(w_p * w_p, axis=1)[None, :]             # (1, K_pad), hoisted

    kernel = functools.partial(
        _clustering_kernel,
        inv_alpha=1.0 / float(alpha),
        exponent=(float(alpha) + 1.0) / 2.0,
        k_valid=K,
    )

    out = pl.pallas_call(
        kernel,
        out_shape=jax.ShapeDtypeStruct((B_pad, K_pad), jnp.float32),
        grid_spec=pltpu.PrefetchScalarGridSpec(
            num_scalar_prefetch=0,
            grid=(B_pad // TB,),
            in_specs=[
                pl.BlockSpec((TB, D_pad), lambda i: (i, 0)),      # x tile, pipelined
                pl.BlockSpec((K_pad, D_pad), lambda i: (0, 0)),   # weights, resident
                pl.BlockSpec((1, K_pad), lambda i: (0, 0)),       # ||w||^2, resident
            ],
            out_specs=pl.BlockSpec((TB, K_pad), lambda i: (i, 0)),
        ),
        compiler_params=pltpu.CompilerParams(
            dimension_semantics=("parallel",),                    # megacore-shardable
            vmem_limit_bytes=32 * 1024 * 1024,
        ),
    )(x_p, w_p, w_norm)

    return out[:B, :K]


def xavier_uniform(key, out_features, in_features, dtype=jnp.float32):
    # Matches torch.nn.init.xavier_uniform_ with gain=1.
    bound = (6.0 / (in_features + out_features)) ** 0.5
    return jax.random.uniform(
        key, (out_features, in_features), dtype=dtype, minval=-bound, maxval=bound)


def reference_forward(x, weight, alpha=1.0):
    # Pure-JAX reference matching the PyTorch forward exactly.
    d = jnp.sum((x[:, None, :] - weight[None, :, :]) ** 2, axis=2)
    q = 1.0 / (1.0 + d / alpha)
    q = q ** ((alpha + 1.0) / 2.0)
    return q / jnp.sum(q, axis=1, keepdims=True)


if __name__ == "__main__":
    key = jax.random.PRNGKey(0)
    k_x, k_w = jax.random.split(key)

    # ClusterlingLayer inside CAE_bn5: in_features = out_features = num_clusters = 10.
    batch = 8
    in_features = 10
    out_features = 10
    alpha = 1.0

    x = jax.random.normal(k_x, (batch, in_features), dtype=jnp.float32)
    weight = xavier_uniform(k_w, out_features, in_features)

    q = clustering_layer(x, weight, alpha=alpha)
    q = jax.block_until_ready(q)

    q_ref = reference_forward(x, weight, alpha=alpha)
    assert q.shape == (batch, out_features)
    assert jnp.allclose(q, q_ref, atol=2e-5, rtol=1e-4), "mismatch vs reference"
    assert jnp.allclose(jnp.sum(q, axis=1), 1.0, atol=1e-5), "rows must sum to 1"

    # Second check exercising multiple batch tiles + batch padding (B=300 -> 3 grid steps).
    x2 = jax.random.normal(jax.random.PRNGKey(1), (300, in_features), dtype=jnp.float32)
    q2 = jax.block_until_ready(clustering_layer(x2, weight, alpha=alpha))
    q2_ref = reference_forward(x2, weight, alpha=alpha)
    assert q2.shape == (300, out_features)
    assert jnp.allclose(q2, q2_ref, atol=2e-5, rtol=1e-4), "tiled mismatch vs reference"
    assert jnp.allclose(jnp.sum(q2, axis=1), 1.0, atol=1e-5), "tiled rows must sum to 1"

    print("KERNEL_OK")
</pallas_src>

<mosaic_0001>
module attributes {stable_mosaic.version = 11 : i64} {
  func.func @_clustering_kernel(%arg0: i32, %arg1: memref<8x128xf32, #tpu.memory_space<vmem>>, %arg2: memref<128x128xf32, #tpu.memory_space<vmem>>, %arg3: memref<1x128xf32, #tpu.memory_space<vmem>>, %arg4: memref<8x128xf32, #tpu.memory_space<vmem>>) attributes {dimension_semantics = [#tpu.dimension_semantics<parallel>], iteration_bounds = array<i64: 1>, scalar_prefetch = 0 : i64, scratch_operands = 0 : i64, tpu.core_type = #tpu.core_type<tc>, window_params = [{transform_indices = @transform_0, window_bounds = array<i64: 8, 128>}, {pipeline_mode = #tpu.pipeline_mode<synchronous>, transform_indices = @transform_1, window_bounds = array<i64: 128, 128>}, {pipeline_mode = #tpu.pipeline_mode<synchronous>, transform_indices = @transform_2, window_bounds = array<i64: 1, 128>}, {transform_indices = @transform_3, window_bounds = array<i64: 8, 128>}]} {
    %c0 = arith.constant 0 : index
    %c0_0 = arith.constant 0 : index
    %0 = vector.load %arg1[%c0, %c0_0] : memref<8x128xf32, #tpu.memory_space<vmem>>, vector<8x128xf32>
    %c0_1 = arith.constant 0 : index
    %c0_2 = arith.constant 0 : index
    %1 = vector.load %arg2[%c0_1, %c0_2] : memref<128x128xf32, #tpu.memory_space<vmem>>, vector<128x128xf32>
    %cst = arith.constant dense<0.000000e+00> : vector<8x128xf32>
    %2 = tpu.matmul %0, %1, %cst {dimension_numbers = #tpu.dot_dimension_numbers<[1], [1], [0], [0], [0, 0, 1, 0], [], []>} : vector<8x128xf32>, vector<128x128xf32>, vector<8x128xf32> -> vector<8x128xf32>
    %3 = arith.mulf %0, %0 : vector<8x128xf32>
    %cst_3 = arith.constant dense<0.000000e+00> : vector<8xf32>
    %4 = vector.multi_reduction <add>, %3, %cst_3 [1] : vector<8x128xf32> to vector<8xf32>
    %5 = vector.shape_cast %4 : vector<8xf32> to vector<8x1xf32>
    %c0_4 = arith.constant 0 : index
    %c0_5 = arith.constant 0 : index
    %6 = vector.load %arg3[%c0_4, %c0_5] : memref<1x128xf32, #tpu.memory_space<vmem>>, vector<1x128xf32>
    %7 = vector.broadcast %5 : vector<8x1xf32> to vector<8x128xf32>
    %8 = vector.broadcast %6 : vector<1x128xf32> to vector<8x128xf32>
    %9 = arith.addf %7, %8 : vector<8x128xf32>
    %cst_6 = arith.constant 2.000000e+00 : f32
    %10 = vector.broadcast %cst_6 : f32 to vector<8x128xf32>
    %11 = arith.mulf %10, %2 : vector<8x128xf32>
    %12 = arith.subf %9, %11 : vector<8x128xf32>
    %cst_7 = arith.constant 0.000000e+00 : f32
    %13 = vector.broadcast %cst_7 : f32 to vector<8x128xf32>
    %14 = arith.maximumf %12, %13 : vector<8x128xf32>
    %cst_8 = arith.constant 1.000000e+00 : f32
    %15 = vector.broadcast %cst_8 : f32 to vector<8x128xf32>
    %16 = arith.mulf %14, %15 : vector<8x128xf32>
    %cst_9 = arith.constant 1.000000e+00 : f32
    %17 = vector.broadcast %cst_9 : f32 to vector<8x128xf32>
    %18 = arith.addf %17, %16 : vector<8x128xf32>
    %cst_10 = arith.constant 1.000000e+00 : f32
    %19 = vector.broadcast %cst_10 : f32 to vector<8x128xf32>
    %20 = arith.divf %19, %18 : vector<8x128xf32>
    %21 = tpu.iota {dimensions = array<i32: 1>} : vector<8x128xi32>
    %c10_i32 = arith.constant 10 : i32
    %22 = vector.broadcast %c10_i32 : i32 to vector<8x128xi32>
    %23 = arith.cmpi slt, %21, %22 : vector<8x128xi32>
    %cst_11 = arith.constant 0.000000e+00 : f32
    %24 = vector.broadcast %cst_11 : f32 to vector<8x128xf32>
    %25 = arith.select %23, %20, %24 : vector<8x128xi1>, vector<8x128xf32>
    %cst_12 = arith.constant dense<0.000000e+00> : vector<8xf32>
    %26 = vector.multi_reduction <add>, %25, %cst_12 [1] : vector<8x128xf32> to vector<8xf32>
    %27 = vector.shape_cast %26 : vector<8xf32> to vector<8x1xf32>
    %28 = vector.broadcast %27 : vector<8x1xf32> to vector<8x128xf32>
    %29 = arith.divf %25, %28 : vector<8x128xf32>
    %c0_13 = arith.constant 0 : index
    %c0_14 = arith.constant 0 : index
    %30 = vector.load %arg4[%c0_13, %c0_14] : memref<8x128xf32, #tpu.memory_space<vmem>>, vector<8x128xf32>
    tpu.vector_store %arg4[%c0_13, %c0_14], %29 {strides = array<i32>} : memref<8x128xf32, #tpu.memory_space<vmem>>, vector<8x128xf32>,
    return
  }
  func.func @transform_0(%arg0: i32) -> (i32, i32) {
    %c0_i32 = arith.constant 0 : i32
    %c0_i32_0 = arith.constant 0 : i32
    return %arg0, %c0_i32 : i32, i32
  }
  func.func @transform_1(%arg0: i32) -> (i32, i32) {
    %c0_i32 = arith.constant 0 : i32
    %c0_i32_0 = arith.constant 0 : i32
    %c0_i32_1 = arith.constant 0 : i32
    return %c0_i32, %c0_i32_0 : i32, i32
  }
  func.func @transform_2(%arg0: i32) -> (i32, i32) {
    %c0_i32 = arith.constant 0 : i32
    %c0_i32_0 = arith.constant 0 : i32
    %c0_i32_1 = arith.constant 0 : i32
    return %c0_i32, %c0_i32_0 : i32, i32
  }
  func.func @transform_3(%arg0: i32) -> (i32, i32) {
    %c0_i32 = arith.constant 0 : i32
    %c0_i32_0 = arith.constant 0 : i32
    return %arg0, %c0_i32 : i32, i32
  }
}

</mosaic_0001>

<llo_original>
// kernel: tpu_custom_call.1
$region0: #{tpu_custom_call.1}
  #allocation0 [shape = 'u32[]', space=smem, size = 0x4, offset = 0x4, fixed_abs, tag = 'smem constant byte address 0x4 - core index']
  #allocation1 [shape = 'u32[72,128]{1,0:T(1,128)}', space=vmem, size = 0x9000, scoped, tag = 'internal scratch']
  %s0 = inlined_call_operand.hbm [shape: f32[8,128], index: 0, kind: input, shape index: {}]
  %s1 = inlined_call_operand.hbm [shape: f32[128,128], index: 1, kind: input, shape index: {}]
  %s2 = inlined_call_operand.vmem [shape: f32[1,128], index: 2, kind: input, shape index: {}]
  %s3 = inlined_call_operand.hbm [shape: f32[8,128], index: 3, kind: output, shape index: {}]
  %s4 = sld [smem:[#allocation0]]
  $region30: #{tpu_custom_call.1} parent=0
    _
  %s6 = ssub.s32 1, %s4
  %s7 = scalar_select 0, %s6, %s4
  $region1: #{tpu_custom_call.1} parent=0
    #allocation2 [shape = 'u8[4096]{0}', space=vmem, size = 0x1000, scoped, tag = 'input window, operand 0, single buffered']
    #allocation3 [shape = 's32[1]{0}', space=sflag, size = 0x4, scoped, tag = 'scoped memory for tpu_custom_call.1']
    #allocation4 [shape = 's32[1]{0}', space=sflag, size = 0x4, scoped, tag = 'scoped memory for tpu_custom_call.1']
    #allocation5 [shape = 'u8[65536]{0}', space=vmem, size = 0x10000, scoped, tag = 'input window, operand 1, single buffered']
    #allocation6 [shape = 's32[1]{0}', space=sflag, size = 0x4, scoped, tag = 'scoped memory for tpu_custom_call.1']
    #allocation7 [shape = 'u8[4096]{0}', space=vmem, size = 0x1000, scoped, tag = 'output window, operand 0, single buffered']
    %8 = vsyncpa [#allocation3], 0
    %9 = vsyncpa [#allocation6], 0
    %10 = vsyncpa [#allocation4], 0
    // Predicated region
    $region2: #{tpu_custom_call.1} parent=1 // pred_check
      _
    $region3: #{tpu_custom_call.1} parent=1 // pred_check_branch
      %12 = sbr.rel (0) target = $region5
    $region4: #{tpu_custom_call.1} parent=1 // pred_region
      %14 = vsyncadd [#allocation3], 0
      %s16 = sshll.u32 %s0, 4
      %s17 = int_to_ptr.hbm [resolvable:$true] %s16
      %s18 = sshll.u32 [#allocation2], 4
      %s19 = int_to_ptr.vmem [resolvable:$true] %s18
      %21 = dma.hbm_to_vmem [thread:$0]  %s17, 128, %s19, [#allocation3]
    $region5: #{tpu_custom_call.1} parent=1 // pred_fallthru
      _
    // Predicated region
    $region6: #{tpu_custom_call.1} parent=1 // pred_check
      _
    $region7: #{tpu_custom_call.1} parent=1 // pred_check_branch
      %23 = sbr.rel (0) target = $region9
    $region8: #{tpu_custom_call.1} parent=1 // pred_region
      %25 = vsyncadd [#allocation6], 0
      %s26 = sshll.u32 %s1, 4
      %s27 = int_to_ptr.hbm [resolvable:$true] %s26
      %s28 = sshll.u32 [#allocation5], 4
      %s29 = int_to_ptr.vmem [resolvable:$true] %s28
      %34 = dma.hbm_to_vmem [thread:$0]  %s27, 2048, %s29, [#allocation6], 128, 128, 8
    $region9: #{tpu_custom_call.1} parent=1 // pred_fallthru
      _
    // Predicated region
    $region10: #{tpu_custom_call.1} parent=1 // pred_check
      _
    $region11: #{tpu_custom_call.1} parent=1 // pred_check_branch
      %36 = sbr.rel (0) target = $region13
    $region12: #{tpu_custom_call.1} parent=1 // pred_region
      _
    $region13: #{tpu_custom_call.1} parent=1 // pred_fallthru
      _
    // Predicated region
    $region14: #{tpu_custom_call.1} parent=1 // pred_check
      _
    $region15: #{tpu_custom_call.1} parent=1 // pred_check_branch
      %38 = sbr.rel (0) target = $region17
    $region16: #{tpu_custom_call.1} parent=1 // pred_region
      %40 = dma.done [#allocation3], 128
    $region17: #{tpu_custom_call.1} parent=1 // pred_fallthru
      _
    // Predicated region
    $region18: #{tpu_custom_call.1} parent=1 // pred_check
      _
    $region19: #{tpu_custom_call.1} parent=1 // pred_check_branch
      %42 = sbr.rel (0) target = $region21
    $region20: #{tpu_custom_call.1} parent=1 // pred_region
      %44 = dma.done [#allocation6], 2048
    $region21: #{tpu_custom_call.1} parent=1 // pred_fallthru
      _
    %v45 = vld [vmem:[#allocation2] sm:$0xff]
    %v46 = vld [vmem:[#allocation5] sm:$0xff]
    %v47 = vld [vmem:[#allocation5 + $0x8] sm:$0xff]
    %v48 = vld [vmem:[#allocation5 + $0x10] sm:$0xff]
    %v49 = vld [vmem:[#allocation5 + $0x18] sm:$0xff]
    %v50 = vld [vmem:[#allocation5 + $0x20] sm:$0xff]
    %v51 = vld [vmem:[#allocation5 + $0x28] sm:$0xff]
    %v52 = vld [vmem:[#allocation5 + $0x30] sm:$0xff]
    %v53 = vld [vmem:[#allocation5 + $0x38] sm:$0xff]
    %v54 = vld [vmem:[#allocation5 + $0x40] sm:$0xff]
    %v55 = vld [vmem:[#allocation5 + $0x48] sm:$0xff]
    %v56 = vld [vmem:[#allocation5 + $0x50] sm:$0xff]
    %v57 = vld [vmem:[#allocation5 + $0x58] sm:$0xff]
    %v58 = vld [vmem:[#allocation5 + $0x60] sm:$0xff]
    %v59 = vld [vmem:[#allocation5 + $0x68] sm:$0xff]
    %v60 = vld [vmem:[#allocation5 + $0x70] sm:$0xff]
    %v61 = vld [vmem:[#allocation5 + $0x78] sm:$0xff]
    %62 = vmatpush.xpose.msra.mxu0 %v61
    %63 = vmatpush.xpose.msra.mxu0 %v60
    %64 = vmatpush.xpose.msra.mxu0 %v59
    %65 = vmatpush.xpose.msra.mxu0 %v58
    %66 = vmatpush.xpose.msra.mxu0 %v57
    %67 = vmatpush.xpose.msra.mxu0 %v56
    %68 = vmatpush.xpose.msra.mxu0 %v55
    %69 = vmatpush.xpose.msra.mxu0 %v54
    %70 = vmatpush.xpose.msra.mxu0 %v53
    %71 = vmatpush.xpose.msra.mxu0 %v52
    %72 = vmatpush.xpose.msra.mxu0 %v51
    %73 = vmatpush.xpose.msra.mxu0 %v50
    %74 = vmatpush.xpose.msra.mxu0 %v49
    %75 = vmatpush.xpose.msra.mxu0 %v48
    %76 = vmatpush.xpose.msra.mxu0 %v47
    %77 = vmatpush.xpose.msra.mxu0 %v46
    %78 = vmatmul.f32.gmra.mxu0 %v45
    %v79 = vpop.f32.mrf.mxu0
    %v80 = vadd.f32 0.0, %v79
    %81 = vdwg.mxu0
    %v82 = vmul.f32 %v45, %v45
    %83 = vadd.xlane.f32.xlu0 %v82
    %v84 = vpop.xlane.xlu0 %83
    %v85 = vld [vmem:[%s2] sm:$0x1]
    %v87 = vperm.slane %v85, 0
    %v89 = vadd.f32 %v84, %v87
    %v90 = vmul.f32 %v80, 2.0
    %v91 = vsub.f32 %v89, %v90
    %v92 = vmax.f32 %v91, 0.0
    %v93 = vadd.f32 %v92, 1.0
    %v94 = vrcp.pop %v93
    %v95 = vmul.f32 %v93, %v94
    %v96 = vsub.f32 1.0, %v95
    %v97 = vmul.f32 %v94, %v96
    %v98 = vadd.f32 %v94, %v97
    %vm99 = vweird.f32 %v93
    %vm100 = vweird.f32 %v94
    %vm101 = vmor %vm99, %vm100
    %v102 = vsel %vm101, %v94, %v98
    %v103 = vand.u32 2147483647, %v93
    %vm104 = vcmp.eq.f32.partialorder %v103, 8.507059e+37
    %v105 = vand.u32 %v93, 2147483648
    %v106 = vor.u32 1.1754944e-38, %v105
    %v107 = vsel %vm104, %v106, %v102
    %v108 = vmul.f32 1.0, %v107
    %v109 = vlaneseq
    %v110 = vand.u32 %v109, 127
    %vm111 = vcmp.lt.s32.totalorder %v110, 10
    %v112 = vsel %vm111, %v108, 0.0
    %113 = vadd.xlane.f32.xlu0 %v112
    %v114 = vpop.xlane.xlu0 %113
    %v115 = vrcp.pop %v114
    %v116 = vmul.f32 %v114, %v115
    %v117 = vsub.f32 1.0, %v116
    %v118 = vmul.f32 %v115, %v117
    %v119 = vadd.f32 %v115, %v118
    %vm120 = vweird.f32 %v114
    %vm121 = vweird.f32 %v115
    %vm122 = vmor %vm120, %vm121
    %v123 = vsel %vm122, %v115, %v119
    %v124 = vand.u32 2147483647, %v114
    %vm125 = vcmp.eq.f32.partialorder %v124, 8.507059e+37
    %v126 = vand.u32 %v114, 2147483648
    %v127 = vor.u32 1.1754944e-38, %v126
    %v128 = vsel %vm125, %v127, %v123
    %v129 = vmul.f32 %v112, %v128
    %130 = vst [vmem:[#allocation7] sm:$0xff] %v129
    // Predicated region
    $region22: #{tpu_custom_call.1} parent=1 // pred_check
      _
    $region23: #{tpu_custom_call.1} parent=1 // pred_check_branch
      %132 = sbr.rel (0) target = $region25
    $region24: #{tpu_custom_call.1} parent=1 // pred_region
      %134 = vsyncadd [#allocation4], 0
      %s136 = sshll.u32 [#allocation7], 4
      %s137 = int_to_ptr.vmem [resolvable:$true] %s136
      %s138 = sshll.u32 %s3, 4
      %s139 = int_to_ptr.hbm [resolvable:$true] %s138
      %141 = dma.vmem_to_hbm [thread:$0]  %s137, 128, %s139, [#allocation4]
    $region25: #{tpu_custom_call.1} parent=1 // pred_fallthru
      _
    // Predicated region
    $region26: #{tpu_custom_call.1} parent=1 // pred_check
      _
    $region27: #{tpu_custom_call.1} parent=1 // pred_check_branch
      %143 = sbr.rel (0) target = $region29
    $region28: #{tpu_custom_call.1} parent=1 // pred_region
      %145 = dma.done [#allocation4], 128
    $region29: #{tpu_custom_call.1} parent=1 // pred_fallthru
      _
    %146 = vsyncpa [#allocation3], 1
    %147 = vsyncpa [#allocation6], 1
    %148 = vsyncpa [#allocation4], 1

</llo_original>
